<compile_context>
chip_gen: v5e
topology: v5e:2x2
jax: 0.10.0
libtpu: 0.0.40
codegen_flags: <defaults>
</compile_context>

<pallas_src>
import functools

import jax
import jax.numpy as jnp
import numpy as np
from jax.experimental import pallas as pl
from jax.experimental.pallas import tpu as pltpu


# ----------------------------------------------------------------------------
# Pallas kernel: one batch block of pop_block rows, all H steps, lane-dense.
# ----------------------------------------------------------------------------
def _mscem_kernel(s_ref, obs_ref, D_ref, GM_ref, WQ_ref, WA_ref, WG_ref, out_ref, *, nx):
    s_raw = s_ref[...]                                           # (pb, H*nxa)
    # Overwrite the step-0 state (lanes [0, nx)) with the observation in-register.
    obs_b = jnp.broadcast_to(obs_ref[...], s_raw.shape)          # (pb, H*nxa)
    lane = jax.lax.broadcasted_iota(jnp.int32, s_raw.shape, 1)
    s = jnp.where(lane < nx, obs_b, s_raw)

    # Fused linear dynamics across the whole horizon: block-diagonal [A;B].
    xn = jnp.dot(s, D_ref[...], preferred_element_type=jnp.float32)     # (pb, H*nx)
    # Shooting gap for steps 0..H-2: xn[m] - sol_x[m+1], as one fused matmul.
    gap = jnp.dot(s, GM_ref[...], preferred_element_type=jnp.float32)   # (pb, (H-1)*nx)

    # Per-step weighted reductions as tiny constant matmuls (MXU is otherwise idle).
    cost = (jnp.dot(xn * xn, WQ_ref[...], preferred_element_type=jnp.float32)
            + jnp.dot(s * s, WA_ref[...], preferred_element_type=jnp.float32))  # (pb, H)
    g2 = jnp.dot(gap * gap, WG_ref[...], preferred_element_type=jnp.float32)    # (pb, H)
    gn = jnp.sqrt(g2)
    # Numerically-stable expm1(gn); column H-1 of WG is zero so its gap cost is exactly 0.
    gcost = jnp.where(gn < 1e-3, gn + 0.5 * gn * gn, jnp.exp(gn) - 1.0)

    out_ref[...] = cost + gcost


# ----------------------------------------------------------------------------
# Chip-/VMEM-aware batch block selection.
# ----------------------------------------------------------------------------
def _pick_pop_block(pop_size, row_bytes, vmem_budget_bytes=None):
    """Largest multiple-of-8 divisor of pop_size whose double-buffered input block fits
    the budget, preferring >= 4 grid steps (helps v7x 2-TC megacore sharding), else >= 2."""
    if vmem_budget_bytes is None:
        try:
            cap = pltpu.get_tpu_info().vmem_capacity_bytes
        except Exception:
            cap = 64 << 20  # v7x per-core floor; also safe for v5e/v6e
        # Quarter of physical capacity for the streamed block; weights/temps/outputs are
        # tiny and already lane-dense (no padding factor needed).
        vmem_budget_bytes = cap // 4
    cands = [d for d in range(8, pop_size + 1, 8) if pop_size % d == 0]
    if not cands:
        return pop_size  # single full block (still legal: block equals full extents)

    def fits(d):
        return 2 * d * row_bytes <= vmem_budget_bytes  # double-buffered f32 input block

    for min_nb in (4, 2, 1):
        ok = [d for d in cands if pop_size // d >= min_nb and fits(d)]
        if ok:
            return max(ok)
    return min(cands)


# ----------------------------------------------------------------------------
# Wrapper: constant-matrix construction + pallas_call.
# ----------------------------------------------------------------------------
def mscem_cost(sol, obs, A, Bm, qw, rw, *, horizon, n_particles, pop_size, nx, na,
               pop_block=None, vmem_limit_bytes=None):
    # n_particles is unused: deterministic stand-in dynamics make the particle mean an
    # identity, so the solution is NOT replicated in HBM (see module docstring).
    del n_particles
    nxa = nx + na
    Hnxa = horizon * nxa
    Hnx = horizon * nx
    gcols = max(horizon - 1, 1) * nx  # padded so horizon == 1 still lowers

    # Lane-dense solution: (pop, H*nxa); no particle replication, no obs scatter here.
    s = jnp.asarray(sol, jnp.float32).reshape(pop_size, Hnxa)
    obs_row = jnp.zeros((1, Hnxa), jnp.float32).at[0, :nx].set(
        jnp.asarray(obs, jnp.float32).reshape(nx))

    # Constant weight matrices (trace-time numpy).
    A_np = np.asarray(A, np.float32)
    B_np = np.asarray(Bm, np.float32)
    qw_np = np.asarray(qw, np.float32).reshape(nx)
    rw_np = np.asarray(rw, np.float32).reshape(na)
    AB = np.concatenate([A_np, B_np], axis=0)                    # (nxa, nx)

    D = np.zeros((Hnxa, Hnx), np.float32)                        # block-diag dynamics
    WQ = np.zeros((Hnx, horizon), np.float32)                    # per-step state-cost weights
    WA = np.zeros((Hnxa, horizon), np.float32)                   # per-step action-cost weights
    GM = np.zeros((Hnxa, gcols), np.float32)                     # gap map: dyn - shift
    WG = np.zeros((gcols, horizon), np.float32)                  # gap sum-of-squares selector
    for m in range(horizon):
        D[m * nxa:(m + 1) * nxa, m * nx:(m + 1) * nx] = AB
        WQ[m * nx:(m + 1) * nx, m] = qw_np
        WA[m * nxa + nx:(m + 1) * nxa, m] = rw_np
    for m in range(horizon - 1):
        GM[m * nxa:(m + 1) * nxa, m * nx:(m + 1) * nx] = AB                       # xn[m]
        GM[(m + 1) * nxa + np.arange(nx), m * nx + np.arange(nx)] -= 1.0          # -sol_x[m+1]
        WG[m * nx:(m + 1) * nx, m] = 1.0
    # Column (horizon-1) of WG stays zero -> last-step gap cost is exactly zero.

    if pop_block is None:
        pop_block = _pick_pop_block(pop_size, Hnxa * 4)
    if pop_size % pop_block != 0 or (pop_block % 8 != 0 and pop_block != pop_size):
        pop_block = pop_size
    nb = pop_size // pop_block

    kernel = functools.partial(_mscem_kernel, nx=nx)

    grid_spec = pltpu.PrefetchScalarGridSpec(
        num_scalar_prefetch=0,
        grid=(nb,),
        in_specs=[
            pl.BlockSpec((pop_block, Hnxa), lambda i: (i, 0)),   # solution block (streamed)
            pl.BlockSpec((1, Hnxa), lambda i: (0, 0)),           # padded obs row
            pl.BlockSpec((Hnxa, Hnx), lambda i: (0, 0)),         # block-diag [A;B]
            pl.BlockSpec((Hnxa, gcols), lambda i: (0, 0)),       # gap map
            pl.BlockSpec((Hnx, horizon), lambda i: (0, 0)),      # state-cost weights
            pl.BlockSpec((Hnxa, horizon), lambda i: (0, 0)),     # action-cost weights
            pl.BlockSpec((gcols, horizon), lambda i: (0, 0)),    # gap-norm selector
        ],
        out_specs=pl.BlockSpec((pop_block, horizon), lambda i: (i, 0)),
    )
    return pl.pallas_call(
        kernel,
        out_shape=jax.ShapeDtypeStruct((pop_size, horizon), jnp.float32),
        grid_spec=grid_spec,
        compiler_params=pltpu.CompilerParams(
            dimension_semantics=("parallel",),
            vmem_limit_bytes=vmem_limit_bytes,
        ),
    )(s, obs_row, jnp.asarray(D), jnp.asarray(GM), jnp.asarray(WQ),
      jnp.asarray(WA), jnp.asarray(WG))


# ----------------------------------------------------------------------------
# Pure-JAX reference mirroring the torch forward loop (for verification).
# ----------------------------------------------------------------------------
def reshape_sol_time_major(sol, horizon, n_particles, nxa):
    pop = sol.shape[0]
    s = sol.reshape(pop, horizon, nxa)
    s = jnp.transpose(s, (1, 0, 2))                               # (H, pop, nxa)
    s = jnp.broadcast_to(s[:, :, None, :], (horizon, pop, n_particles, nxa))
    return s.reshape(horizon, pop * n_particles, nxa)


def mscem_cost_ref(sol, obs, A, Bm, qw, rw, *, horizon, n_particles, pop_size, nx, na):
    hp = jax.lax.Precision.HIGHEST
    nxa = nx + na
    B = pop_size * n_particles
    s = reshape_sol_time_major(sol, horizon, n_particles, nxa)
    sol_x = s[:, :, :nx].at[0].set(jnp.broadcast_to(obs.reshape(1, nx), (B, nx)))
    sol_a = s[:, :, nx:]
    costs = jnp.zeros((pop_size, horizon), jnp.float32)
    for m in range(horizon):
        x = sol_x[m]
        a = sol_a[m]
        xn = jnp.dot(x, A, precision=hp) + jnp.dot(a, Bm, precision=hp)
        cost = jnp.sum(xn * xn * qw, axis=-1) + jnp.sum(a * a * rw, axis=-1)
        costs = costs.at[:, m].set(cost.reshape(pop_size, n_particles).mean(axis=1))
        if m < horizon - 1:
            gap = xn - sol_x[m + 1]
            gcost = jnp.expm1(jnp.sqrt(jnp.sum(gap * gap, axis=1)))
        else:
            gcost = jnp.zeros((B,), jnp.float32)
        costs = costs.at[:, m].add(gcost.reshape(pop_size, n_particles).mean(axis=1))
    return costs


if __name__ == "__main__":
    horizon, n_particles, pop_size = 8, 8, 16
    nx, na = 12, 4
    nxa = nx + na

    key = jax.random.PRNGKey(0)
    k1, k2 = jax.random.split(key)
    sol = 0.1 * jax.random.normal(k1, (pop_size, horizon * nxa), jnp.float32)
    obs = 0.1 * jax.random.normal(k2, (nx,), jnp.float32)

    # Deterministic synthetic parameters (stand-ins for dynamics / task_cost modules).
    i = jnp.arange(nx, dtype=jnp.float32)
    j = jnp.arange(na, dtype=jnp.float32)
    A = 0.9 * jnp.eye(nx, dtype=jnp.float32) + 0.01 * jnp.cos(i[:, None] - i[None, :])
    Bm = 0.05 * jnp.sin(j[:, None] + i[None, :])
    qw = (1.0 + 0.1 * i / nx).reshape(1, nx).astype(jnp.float32)
    rw = 0.1 * jnp.ones((1, na), jnp.float32)

    kwargs = dict(horizon=horizon, n_particles=n_particles, pop_size=pop_size, nx=nx, na=na)
    out = jax.block_until_ready(mscem_cost(sol, obs, A, Bm, qw, rw, **kwargs))
    ref = jax.block_until_ready(mscem_cost_ref(sol, obs, A, Bm, qw, rw, **kwargs))

    assert out.shape == (pop_size, horizon), out.shape
    # Tolerance leaves margin for MXU multi-pass f32 matmul accumulation order.
    np.testing.assert_allclose(np.asarray(out), np.asarray(ref), rtol=1e-3, atol=1e-5)
    print("KERNEL_OK")
</pallas_src>

<mosaic_0001>
module attributes {stable_mosaic.version = 11 : i64} {
  func.func @_mscem_kernel(%arg0: i32, %arg1: memref<8x128xf32, #tpu.memory_space<vmem>>, %arg2: memref<1x128xf32, #tpu.memory_space<vmem>>, %arg3: memref<128x96xf32, #tpu.memory_space<vmem>>, %arg4: memref<128x84xf32, #tpu.memory_space<vmem>>, %arg5: memref<96x8xf32, #tpu.memory_space<vmem>>, %arg6: memref<128x8xf32, #tpu.memory_space<vmem>>, %arg7: memref<84x8xf32, #tpu.memory_space<vmem>>, %arg8: memref<8x8xf32, #tpu.memory_space<vmem>>) attributes {dimension_semantics = [#tpu.dimension_semantics<parallel>], iteration_bounds = array<i64: 2>, scalar_prefetch = 0 : i64, scratch_operands = 0 : i64, tpu.core_type = #tpu.core_type<tc>, window_params = [{transform_indices = @transform_0, window_bounds = array<i64: 8, 128>}, {pipeline_mode = #tpu.pipeline_mode<synchronous>, transform_indices = @transform_1, window_bounds = array<i64: 1, 128>}, {pipeline_mode = #tpu.pipeline_mode<synchronous>, transform_indices = @transform_2, window_bounds = array<i64: 128, 96>}, {pipeline_mode = #tpu.pipeline_mode<synchronous>, transform_indices = @transform_3, window_bounds = array<i64: 128, 84>}, {pipeline_mode = #tpu.pipeline_mode<synchronous>, transform_indices = @transform_4, window_bounds = array<i64: 96, 8>}, {pipeline_mode = #tpu.pipeline_mode<synchronous>, transform_indices = @transform_5, window_bounds = array<i64: 128, 8>}, {pipeline_mode = #tpu.pipeline_mode<synchronous>, transform_indices = @transform_6, window_bounds = array<i64: 84, 8>}, {transform_indices = @transform_7, window_bounds = array<i64: 8, 8>}]} {
    %c0 = arith.constant 0 : index
    %c0_0 = arith.constant 0 : index
    %0 = vector.load %arg1[%c0, %c0_0] : memref<8x128xf32, #tpu.memory_space<vmem>>, vector<8x128xf32>
    %c0_1 = arith.constant 0 : index
    %c0_2 = arith.constant 0 : index
    %1 = vector.load %arg2[%c0_1, %c0_2] : memref<1x128xf32, #tpu.memory_space<vmem>>, vector<1x128xf32>
    %2 = vector.shape_cast %1 : vector<1x128xf32> to vector<1x128xf32>
    %3 = vector.broadcast %2 : vector<1x128xf32> to vector<8x128xf32>
    %4 = tpu.iota {dimensions = array<i32: 1>} : vector<8x128xi32>
    %c12_i32 = arith.constant 12 : i32
    %5 = vector.broadcast %c12_i32 : i32 to vector<8x128xi32>
    %6 = arith.cmpi slt, %4, %5 : vector<8x128xi32>
    %7 = arith.select %6, %3, %0 : vector<8x128xi1>, vector<8x128xf32>
    %c0_3 = arith.constant 0 : index
    %c0_4 = arith.constant 0 : index
    %8 = vector.load %arg3[%c0_3, %c0_4] : memref<128x96xf32, #tpu.memory_space<vmem>>, vector<128x96xf32>
    %cst = arith.constant dense<0.000000e+00> : vector<8x96xf32>
    %9 = tpu.matmul %7, %8, %cst {dimension_numbers = #tpu.dot_dimension_numbers<[1], [0], [0], [1], [0, 0, 1, 1], [], []>} : vector<8x128xf32>, vector<128x96xf32>, vector<8x96xf32> -> vector<8x96xf32>
    %c0_5 = arith.constant 0 : index
    %c0_6 = arith.constant 0 : index
    %10 = vector.load %arg4[%c0_5, %c0_6] : memref<128x84xf32, #tpu.memory_space<vmem>>, vector<128x84xf32>
    %cst_7 = arith.constant dense<0.000000e+00> : vector<8x84xf32>
    %11 = tpu.matmul %7, %10, %cst_7 {dimension_numbers = #tpu.dot_dimension_numbers<[1], [0], [0], [1], [0, 0, 1, 1], [], []>} : vector<8x128xf32>, vector<128x84xf32>, vector<8x84xf32> -> vector<8x84xf32>
    %12 = arith.mulf %9, %9 : vector<8x96xf32>
    %c0_8 = arith.constant 0 : index
    %c0_9 = arith.constant 0 : index
    %13 = vector.load %arg5[%c0_8, %c0_9] : memref<96x8xf32, #tpu.memory_space<vmem>>, vector<96x8xf32>
    %cst_10 = arith.constant dense<0.000000e+00> : vector<8x8xf32>
    %14 = tpu.matmul %12, %13, %cst_10 {dimension_numbers = #tpu.dot_dimension_numbers<[1], [0], [0], [1], [0, 0, 1, 1], [], []>} : vector<8x96xf32>, vector<96x8xf32>, vector<8x8xf32> -> vector<8x8xf32>
    %15 = arith.mulf %7, %7 : vector<8x128xf32>
    %c0_11 = arith.constant 0 : index
    %c0_12 = arith.constant 0 : index
    %16 = vector.load %arg6[%c0_11, %c0_12] : memref<128x8xf32, #tpu.memory_space<vmem>>, vector<128x8xf32>
    %cst_13 = arith.constant dense<0.000000e+00> : vector<8x8xf32>
    %17 = tpu.matmul %15, %16, %cst_13 {dimension_numbers = #tpu.dot_dimension_numbers<[1], [0], [0], [1], [0, 0, 1, 1], [], []>} : vector<8x128xf32>, vector<128x8xf32>, vector<8x8xf32> -> vector<8x8xf32>
    %18 = arith.addf %14, %17 : vector<8x8xf32>
    %19 = arith.mulf %11, %11 : vector<8x84xf32>
    %c0_14 = arith.constant 0 : index
    %c0_15 = arith.constant 0 : index
    %20 = vector.load %arg7[%c0_14, %c0_15] : memref<84x8xf32, #tpu.memory_space<vmem>>, vector<84x8xf32>
    %cst_16 = arith.constant dense<0.000000e+00> : vector<8x8xf32>
    %21 = tpu.matmul %19, %20, %cst_16 {dimension_numbers = #tpu.dot_dimension_numbers<[1], [0], [0], [1], [0, 0, 1, 1], [], []>} : vector<8x84xf32>, vector<84x8xf32>, vector<8x8xf32> -> vector<8x8xf32>
    %22 = math.sqrt %21 : vector<8x8xf32>
    %cst_17 = arith.constant 1.000000e-03 : f32
    %23 = vector.broadcast %cst_17 : f32 to vector<8x8xf32>
    %24 = arith.cmpf olt, %22, %23 : vector<8x8xf32>
    %cst_18 = arith.constant 5.000000e-01 : f32
    %25 = vector.broadcast %cst_18 : f32 to vector<8x8xf32>
    %26 = arith.mulf %25, %22 : vector<8x8xf32>
    %27 = arith.mulf %26, %22 : vector<8x8xf32>
    %28 = arith.addf %22, %27 : vector<8x8xf32>
    %29 = math.exp %22 : vector<8x8xf32>
    %cst_19 = arith.constant 1.000000e+00 : f32
    %30 = vector.broadcast %cst_19 : f32 to vector<8x8xf32>
    %31 = arith.subf %29, %30 : vector<8x8xf32>
    %32 = arith.select %24, %28, %31 : vector<8x8xi1>, vector<8x8xf32>
    %33 = arith.addf %18, %32 : vector<8x8xf32>
    %c0_20 = arith.constant 0 : index
    %c0_21 = arith.constant 0 : index
    %34 = vector.load %arg8[%c0_20, %c0_21] : memref<8x8xf32, #tpu.memory_space<vmem>>, vector<8x8xf32>
    tpu.vector_store %arg8[%c0_20, %c0_21], %33 {strides = array<i32>} : memref<8x8xf32, #tpu.memory_space<vmem>>, vector<8x8xf32>,
    return
  }
  func.func @transform_0(%arg0: i32) -> (i32, i32) {
    %c0_i32 = arith.constant 0 : i32
    %c0_i32_0 = arith.constant 0 : i32
    return %arg0, %c0_i32 : i32, i32
  }
  func.func @transform_1(%arg0: i32) -> (i32, i32) {
    %c0_i32 = arith.constant 0 : i32
    %c0_i32_0 = arith.constant 0 : i32
    %c0_i32_1 = arith.constant 0 : i32
    return %c0_i32, %c0_i32_0 : i32, i32
  }
  func.func @transform_2(%arg0: i32) -> (i32, i32) {
    %c0_i32 = arith.constant 0 : i32
    %c0_i32_0 = arith.constant 0 : i32
    %c0_i32_1 = arith.constant 0 : i32
    return %c0_i32, %c0_i32_0 : i32, i32
  }
  func.func @transform_3(%arg0: i32) -> (i32, i32) {
    %c0_i32 = arith.constant 0 : i32
    %c0_i32_0 = arith.constant 0 : i32
    %c0_i32_1 = arith.constant 0 : i32
    return %c0_i32, %c0_i32_0 : i32, i32
  }
  func.func @transform_4(%arg0: i32) -> (i32, i32) {
    %c0_i32 = arith.constant 0 : i32
    %c0_i32_0 = arith.constant 0 : i32
    %c0_i32_1 = arith.constant 0 : i32
    return %c0_i32, %c0_i32_0 : i32, i32
  }
  func.func @transform_5(%arg0: i32) -> (i32, i32) {
    %c0_i32 = arith.constant 0 : i32
    %c0_i32_0 = arith.constant 0 : i32
    %c0_i32_1 = arith.constant 0 : i32
    return %c0_i32, %c0_i32_0 : i32, i32
  }
  func.func @transform_6(%arg0: i32) -> (i32, i32) {
    %c0_i32 = arith.constant 0 : i32
    %c0_i32_0 = arith.constant 0 : i32
    %c0_i32_1 = arith.constant 0 : i32
    return %c0_i32, %c0_i32_0 : i32, i32
  }
  func.func @transform_7(%arg0: i32) -> (i32, i32) {
    %c0_i32 = arith.constant 0 : i32
    %c0_i32_0 = arith.constant 0 : i32
    return %arg0, %c0_i32 : i32, i32
  }
}

</mosaic_0001>

<llo_original>
// kernel: tpu_custom_call.1
$region0: #{tpu_custom_call.1}
  #allocation0 [shape = 'u32[]', space=smem, size = 0x4, offset = 0x4, fixed_abs, tag = 'smem constant byte address 0x4 - core index']
  #allocation1 [shape = 'u32[72,128]{1,0:T(1,128)}', space=vmem, size = 0x9000, scoped, tag = 'internal scratch']
  %s0 = inlined_call_operand.vmem [shape: f32[16,128], index: 0, kind: input, shape index: {}]
  %s1 = inlined_call_operand.vmem [shape: f32[1,128], index: 1, kind: input, shape index: {}]
  %s2 = inlined_call_operand.vmem [shape: f32[128,96], index: 2, kind: input, shape index: {}]
  %s3 = inlined_call_operand.vmem [shape: f32[128,84], index: 3, kind: input, shape index: {}]
  %s4 = inlined_call_operand.vmem [shape: f32[96,8], index: 4, kind: input, shape index: {}]
  %s5 = inlined_call_operand.vmem [shape: f32[128,8], index: 5, kind: input, shape index: {}]
  %s6 = inlined_call_operand.vmem [shape: f32[84,8], index: 6, kind: input, shape index: {}]
  %s7 = inlined_call_operand.vmem [shape: f32[16,8], index: 7, kind: output, shape index: {}]
  %s8 = sld [smem:[#allocation0]]
  $region61: #{tpu_custom_call.1} parent=0
    _
  %s10 = ssub.s32 1, %s8
  %s11 = scalar_select 0, %s10, %s8
  loop: start=0, step=1, limit=4
  $region2: #{tpu_custom_call.1} parent=0 // loop_pre_header
    _
  $region3: #{tpu_custom_call.1} parent=0 // loop_header
    %s13 = sphi 0, %s17
    %p14 = scmp.ge.s32.totalorder %s13, 4
    %s23 = sphi 0, %s25
    %s26 = sphi 0, %s23
    %s27 = sphi 0, %s26
    %s43 = sphi 0, %s27
    %s47 = sphi 0, %s47
    %s49 = sphi 0, %s47
    %s50 = sphi 0, %s49
    %s64 = sphi 0, %s50
    %s68 = sphi 0, %s68
    %s70 = sphi 0, %s68
    %s71 = sphi 0, %s70
    %s85 = sphi 0, %s71
    %s89 = sphi 0, %s89
    %s91 = sphi 0, %s89
    %s92 = sphi 0, %s91
    %s106 = sphi 0, %s92
    %s110 = sphi 0, %s110
    %s112 = sphi 0, %s110
    %s113 = sphi 0, %s112
    %s127 = sphi 0, %s113
    %s131 = sphi 0, %s131
    %s133 = sphi 0, %s131
    %s134 = sphi 0, %s133
    %s148 = sphi 0, %s134
    %s152 = sphi 0, %s152
    %s154 = sphi 0, %s152
    %s155 = sphi 0, %s154
    %s169 = sphi 0, %s155
    %s175 = sphi 0, %s177
    %s178 = sphi 0, %s175
    %s179 = sphi 0, %s178
    %s195 = sphi 0, %s179
  $region4: #{tpu_custom_call.1} parent=0 // loop_header_branch
    %16 = sbr.rel (%p14) target = $region8
  $region5: #{tpu_custom_call.1} parent=0 // loop_body
    %s18 = ssub.s32 %s13, 1
    %s19 = ssub.s32 %s13, 2
    %s20 = sadd.s32 %s13, 1
    %s21 = ssub.s32 %s13, %s20
    %p22 = scmp.eq.s32.totalorder %s21, 0
    %s24 = sadd.s32 %s23, 1
    %s25 = scalar_select %p22, %s23, %s24
    %p28 = pneg %p22
    %p29 = scmp.eq.s32.totalorder %s13, 1
    %p30 = por %p28, %p29
    %p31 = scmp.ne.s32.totalorder %s23, %s26
    %p32 = scmp.eq.s32.totalorder %s13, 0
    %p33 = por %p31, %p32
    %p34 = scmp.ne.s32.totalorder %s23, %s26
    %p35 = scmp.eq.s32.totalorder %s18, 1
    %p36 = por %p34, %p35
    %p37 = scmp.ne.s32.totalorder %s26, %s27
    %p38 = scmp.eq.s32.totalorder %s18, 0
    %p39 = por %p37, %p38
    %p40 = scmp.ne.s32.totalorder %s26, %s27
    %p41 = scmp.eq.s32.totalorder %s19, 1
    %p42 = por %p40, %p41
    %p44 = scmp.ne.s32.totalorder %s27, %s43
    %p45 = scmp.eq.s32.totalorder %s19, 0
    %p46 = por %p44, %p45
    %s48 = sadd.s32 %s47, 1
    %p51 = scmp.eq.s32.totalorder %s13, 1
    %p52 = scmp.ne.s32.totalorder %s47, %s49
    %p53 = scmp.eq.s32.totalorder %s13, 0
    %p54 = por %p52, %p53
    %p55 = scmp.ne.s32.totalorder %s47, %s49
    %p56 = scmp.eq.s32.totalorder %s18, 1
    %p57 = por %p55, %p56
    %p58 = scmp.ne.s32.totalorder %s49, %s50
    %p59 = scmp.eq.s32.totalorder %s18, 0
    %p60 = por %p58, %p59
    %p61 = scmp.ne.s32.totalorder %s49, %s50
    %p62 = scmp.eq.s32.totalorder %s19, 1
    %p63 = por %p61, %p62
    %p65 = scmp.ne.s32.totalorder %s50, %s64
    %p66 = scmp.eq.s32.totalorder %s19, 0
    %p67 = por %p65, %p66
    %s69 = sadd.s32 %s68, 1
    %p72 = scmp.eq.s32.totalorder %s13, 1
    %p73 = scmp.ne.s32.totalorder %s68, %s70
    %p74 = scmp.eq.s32.totalorder %s13, 0
    %p75 = por %p73, %p74
    %p76 = scmp.ne.s32.totalorder %s68, %s70
    %p77 = scmp.eq.s32.totalorder %s18, 1
    %p78 = por %p76, %p77
    %p79 = scmp.ne.s32.totalorder %s70, %s71
    %p80 = scmp.eq.s32.totalorder %s18, 0
    %p81 = por %p79, %p80
    %p82 = scmp.ne.s32.totalorder %s70, %s71
    %p83 = scmp.eq.s32.totalorder %s19, 1
    %p84 = por %p82, %p83
    %p86 = scmp.ne.s32.totalorder %s71, %s85
    %p87 = scmp.eq.s32.totalorder %s19, 0
    %p88 = por %p86, %p87
    %s90 = sadd.s32 %s89, 1
    %p93 = scmp.eq.s32.totalorder %s13, 1
    %p94 = scmp.ne.s32.totalorder %s89, %s91
    %p95 = scmp.eq.s32.totalorder %s13, 0
    %p96 = por %p94, %p95
    %p97 = scmp.ne.s32.totalorder %s89, %s91
    %p98 = scmp.eq.s32.totalorder %s18, 1
    %p99 = por %p97, %p98
    %p100 = scmp.ne.s32.totalorder %s91, %s92
    %p101 = scmp.eq.s32.totalorder %s18, 0
    %p102 = por %p100, %p101
    %p103 = scmp.ne.s32.totalorder %s91, %s92
    %p104 = scmp.eq.s32.totalorder %s19, 1
    %p105 = por %p103, %p104
    %p107 = scmp.ne.s32.totalorder %s92, %s106
    %p108 = scmp.eq.s32.totalorder %s19, 0
    %p109 = por %p107, %p108
    %s111 = sadd.s32 %s110, 1
    %p114 = scmp.eq.s32.totalorder %s13, 1
    %p115 = scmp.ne.s32.totalorder %s110, %s112
    %p116 = scmp.eq.s32.totalorder %s13, 0
    %p117 = por %p115, %p116
    %p118 = scmp.ne.s32.totalorder %s110, %s112
    %p119 = scmp.eq.s32.totalorder %s18, 1
    %p120 = por %p118, %p119
    %p121 = scmp.ne.s32.totalorder %s112, %s113
    %p122 = scmp.eq.s32.totalorder %s18, 0
    %p123 = por %p121, %p122
    %p124 = scmp.ne.s32.totalorder %s112, %s113
    %p125 = scmp.eq.s32.totalorder %s19, 1
    %p126 = por %p124, %p125
    %p128 = scmp.ne.s32.totalorder %s113, %s127
    %p129 = scmp.eq.s32.totalorder %s19, 0
    %p130 = por %p128, %p129
    %s132 = sadd.s32 %s131, 1
    %p135 = scmp.eq.s32.totalorder %s13, 1
    %p136 = scmp.ne.s32.totalorder %s131, %s133
    %p137 = scmp.eq.s32.totalorder %s13, 0
    %p138 = por %p136, %p137
    %p139 = scmp.ne.s32.totalorder %s131, %s133
    %p140 = scmp.eq.s32.totalorder %s18, 1
    %p141 = por %p139, %p140
    %p142 = scmp.ne.s32.totalorder %s133, %s134
    %p143 = scmp.eq.s32.totalorder %s18, 0
    %p144 = por %p142, %p143
    %p145 = scmp.ne.s32.totalorder %s133, %s134
    %p146 = scmp.eq.s32.totalorder %s19, 1
    %p147 = por %p145, %p146
    %p149 = scmp.ne.s32.totalorder %s134, %s148
    %p150 = scmp.eq.s32.totalorder %s19, 0
    %p151 = por %p149, %p150
    %s153 = sadd.s32 %s152, 1
    %p156 = scmp.eq.s32.totalorder %s13, 1
    %p157 = scmp.ne.s32.totalorder %s152, %s154
    %p158 = scmp.eq.s32.totalorder %s13, 0
    %p159 = por %p157, %p158
    %p160 = scmp.ne.s32.totalorder %s152, %s154
    %p161 = scmp.eq.s32.totalorder %s18, 1
    %p162 = por %p160, %p161
    %p163 = scmp.ne.s32.totalorder %s154, %s155
    %p164 = scmp.eq.s32.totalorder %s18, 0
    %p165 = por %p163, %p164
    %p166 = scmp.ne.s32.totalorder %s154, %s155
    %p167 = scmp.eq.s32.totalorder %s19, 1
    %p168 = por %p166, %p167
    %p170 = scmp.ne.s32.totalorder %s155, %s169
    %p171 = scmp.eq.s32.totalorder %s19, 0
    %p172 = por %p170, %p171
    %s173 = ssub.s32 %s13, %s20
    %p174 = scmp.eq.s32.totalorder %s173, 0
    %s176 = sadd.s32 %s175, 1
    %s177 = scalar_select %p174, %s175, %s176
    %p180 = pneg %p174
    %p181 = scmp.eq.s32.totalorder %s13, 1
    %p182 = por %p180, %p181
    %p183 = scmp.ne.s32.totalorder %s175, %s178
    %p184 = scmp.eq.s32.totalorder %s13, 0
    %p185 = por %p183, %p184
    %p186 = scmp.ne.s32.totalorder %s175, %s178
    %p187 = scmp.eq.s32.totalorder %s18, 1
    %p188 = por %p186, %p187
    %p189 = scmp.ne.s32.totalorder %s178, %s179
    %p190 = scmp.eq.s32.totalorder %s18, 0
    %p191 = por %p189, %p190
    %p192 = scmp.ne.s32.totalorder %s178, %s179
    %p193 = scmp.eq.s32.totalorder %s19, 1
    %p194 = por %p192, %p193
    %p196 = scmp.ne.s32.totalorder %s179, %s195
    %p197 = scmp.eq.s32.totalorder %s19, 0
    %p198 = por %p196, %p197
    %p199 = scmp.le.s32.totalorder 1, %s13
    %p200 = scmp.lt.s32.totalorder %s13, 3
    %p201 = pnand %p199, %p200
    %p202 = pneg %p201
    // Predicated region
    $region9: #{tpu_custom_call.1} parent=5 // pred_check
      _
    $region10: #{tpu_custom_call.1} parent=5 // pred_check_branch
      %204 = sbr.rel (%p201) target = $region12
    $region11: #{tpu_custom_call.1} parent=5 // pred_region
      %s205 = ssub.s32 %s13, 1
      // Predicated region
      $region13: #{tpu_custom_call.1} parent=11 // pred_check
        %p206 = pneg %p60
      $region14: #{tpu_custom_call.1} parent=11 // pred_check_branch
        %208 = sbr.rel (%p206) target = $region16
      $region15: #{tpu_custom_call.1} parent=11 // pred_region
        _
      $region16: #{tpu_custom_call.1} parent=11 // pred_fallthru
        _
      // Predicated region
      $region17: #{tpu_custom_call.1} parent=11 // pred_check
        %p209 = pneg %p81
      $region18: #{tpu_custom_call.1} parent=11 // pred_check_branch
        %211 = sbr.rel (%p209) target = $region20
      $region19: #{tpu_custom_call.1} parent=11 // pred_region
        _
      $region20: #{tpu_custom_call.1} parent=11 // pred_fallthru
        _
      // Predicated region
      $region21: #{tpu_custom_call.1} parent=11 // pred_check
        %p212 = pneg %p102
      $region22: #{tpu_custom_call.1} parent=11 // pred_check_branch
        %214 = sbr.rel (%p212) target = $region24
      $region23: #{tpu_custom_call.1} parent=11 // pred_region
        _
      $region24: #{tpu_custom_call.1} parent=11 // pred_fallthru
        _
      // Predicated region
      $region25: #{tpu_custom_call.1} parent=11 // pred_check
        %p215 = pneg %p123
      $region26: #{tpu_custom_call.1} parent=11 // pred_check_branch
        %217 = sbr.rel (%p215) target = $region28
      $region27: #{tpu_custom_call.1} parent=11 // pred_region
        _
      $region28: #{tpu_custom_call.1} parent=11 // pred_fallthru
        _
      // Predicated region
      $region29: #{tpu_custom_call.1} parent=11 // pred_check
        %p218 = pneg %p144
      $region30: #{tpu_custom_call.1} parent=11 // pred_check_branch
        %220 = sbr.rel (%p218) target = $region32
      $region31: #{tpu_custom_call.1} parent=11 // pred_region
        _
      $region32: #{tpu_custom_call.1} parent=11 // pred_fallthru
        _
      // Predicated region
      $region33: #{tpu_custom_call.1} parent=11 // pred_check
        %p221 = pneg %p165
      $region34: #{tpu_custom_call.1} parent=11 // pred_check_branch
        %223 = sbr.rel (%p221) target = $region36
      $region35: #{tpu_custom_call.1} parent=11 // pred_region
        _
      $region36: #{tpu_custom_call.1} parent=11 // pred_fallthru
        _
    $region12: #{tpu_custom_call.1} parent=5 // pred_fallthru
      _
    %p224 = scmp.lt.s32.totalorder %s13, 2
    // Predicated region
    $region37: #{tpu_custom_call.1} parent=5 // pred_check
      %p225 = pneg %p224
    $region38: #{tpu_custom_call.1} parent=5 // pred_check_branch
      %227 = sbr.rel (%p225) target = $region40
    $region39: #{tpu_custom_call.1} parent=5 // pred_region
      // Predicated region
      $region41: #{tpu_custom_call.1} parent=39 // pred_check
        %p228 = pneg %p33
      $region42: #{tpu_custom_call.1} parent=39 // pred_check_branch
        %230 = sbr.rel (%p228) target = $region44
      $region43: #{tpu_custom_call.1} parent=39 // pred_region
        %p231 = scmp.lt.s32.totalorder %s13, 1
        %s232 = scalar_select %p231, %s13, 1
        %s233 = smul.addr %s232, 8
        %s234 = scalar_lea.vmem %s0, %s233
      $region44: #{tpu_custom_call.1} parent=39 // pred_fallthru
        _
    $region40: #{tpu_custom_call.1} parent=5 // pred_fallthru
      _
    %p235 = scmp.le.s32.totalorder 1, %s13
    %p236 = scmp.lt.s32.totalorder %s13, 3
    %p237 = pnand %p235, %p236
    %p238 = pneg %p237
    // Predicated region
    $region45: #{tpu_custom_call.1} parent=5 // pred_check
      _
    $region46: #{tpu_custom_call.1} parent=5 // pred_check_branch
      %240 = sbr.rel (%p237) target = $region48
    $region47: #{tpu_custom_call.1} parent=5 // pred_region
      %s241 = ssub.s32 %s13, 1
      %p242 = scmp.lt.s32.totalorder %s18, 1
      %s243 = scalar_select %p242, %s18, 1
      %s244 = smul.addr %s243, 8
      %s245 = scalar_lea.vmem %s0, %s244
      %p246 = pneg %p39
      %p247 = pneg %p36
      %p248 = pneg %p60
      %p249 = pneg %p57
      %p250 = pneg %p81
      %p251 = pneg %p78
      %p252 = pneg %p102
      %p253 = pneg %p99
      %p254 = pneg %p123
      %p255 = pneg %p120
      %p256 = pneg %p144
      %p257 = pneg %p141
      %p258 = pneg %p165
      %p259 = pneg %p162
      %p260 = pneg %p191
      %p261 = pneg %p188
      %p262 = scmp.lt.s32.totalorder %s18, 1
      %s263 = scalar_select %p262, %s18, 1
      %s264 = smul.addr %s263, 8
      %s265 = scalar_lea.vmem %s7, %s264
      %p266 = scmp.lt.s32.totalorder %s18, 1
      %s267 = scalar_select %p266, %s18, 1
      %s268 = smul.addr %s267, 8
      %s269 = scalar_lea.vmem %s0, %s268
      %p270 = scmp.lt.s32.totalorder %s18, 1
      %s271 = scalar_select %p270, %s18, 1
      %s272 = smul.addr %s271, 8
      %s273 = scalar_lea.vmem %s7, %s272
      %v274 = vld [vmem:[%s269] sm:$0xff]
      %v275 = vld [vmem:[%s1] sm:$0x1]
      %v277 = vperm.slane %v275, 0
      %v279 = vlaneseq
      %v280 = vand.u32 %v279, 127
      %vm281 = vcmp.lt.s32.totalorder %v280, 12
      %v282 = vsel %vm281, %v277, %v274
      %v283 = vld [vmem:[%s2] sm:$0xff]
      %v284 = vld [vmem:[%s2 + $0x8] sm:$0xff]
      %v285 = vld [vmem:[%s2 + $0x10] sm:$0xff]
      %v286 = vld [vmem:[%s2 + $0x18] sm:$0xff]
      %v287 = vld [vmem:[%s2 + $0x20] sm:$0xff]
      %v288 = vld [vmem:[%s2 + $0x28] sm:$0xff]
      %v289 = vld [vmem:[%s2 + $0x30] sm:$0xff]
      %v290 = vld [vmem:[%s2 + $0x38] sm:$0xff]
      %v291 = vld [vmem:[%s2 + $0x40] sm:$0xff]
      %v292 = vld [vmem:[%s2 + $0x48] sm:$0xff]
      %v293 = vld [vmem:[%s2 + $0x50] sm:$0xff]
      %v294 = vld [vmem:[%s2 + $0x58] sm:$0xff]
      %v295 = vld [vmem:[%s2 + $0x60] sm:$0xff]
      %v296 = vld [vmem:[%s2 + $0x68] sm:$0xff]
      %v297 = vld [vmem:[%s2 + $0x70] sm:$0xff]
      %v298 = vld [vmem:[%s2 + $0x78] sm:$0xff]
      %299 = vmatpush.msra.mxu0 %v298
      %300 = vmatpush.msra.mxu0 %v297
      %301 = vmatpush.msra.mxu0 %v296
      %302 = vmatpush.msra.mxu0 %v295
      %303 = vmatpush.msra.mxu0 %v294
      %304 = vmatpush.msra.mxu0 %v293
      %305 = vmatpush.msra.mxu0 %v292
      %306 = vmatpush.msra.mxu0 %v291
      %307 = vmatpush.msra.mxu0 %v290
      %308 = vmatpush.msra.mxu0 %v289
      %309 = vmatpush.msra.mxu0 %v288
      %310 = vmatpush.msra.mxu0 %v287
      %311 = vmatpush.msra.mxu0 %v286
      %312 = vmatpush.msra.mxu0 %v285
      %313 = vmatpush.msra.mxu0 %v284
      %314 = vmatpush.msra.mxu0 %v283
      %315 = vmatmul.f32.gmra.mxu0 %v282
      %v316 = vpop.f32.mrf.mxu0
      %v317 = vadd.f32 0.0, %v316
      %318 = vdwg.mxu0
      %v319 = vld [vmem:[%s3] sm:$0xff]
      %v320 = vld [vmem:[%s3 + $0x8] sm:$0xff]
      %v321 = vld [vmem:[%s3 + $0x10] sm:$0xff]
      %v322 = vld [vmem:[%s3 + $0x18] sm:$0xff]
      %v323 = vld [vmem:[%s3 + $0x20] sm:$0xff]
      %v324 = vld [vmem:[%s3 + $0x28] sm:$0xff]
      %v325 = vld [vmem:[%s3 + $0x30] sm:$0xff]
      %v326 = vld [vmem:[%s3 + $0x38] sm:$0xff]
      %v327 = vld [vmem:[%s3 + $0x40] sm:$0xff]
      %v328 = vld [vmem:[%s3 + $0x48] sm:$0xff]
      %v329 = vld [vmem:[%s3 + $0x50] sm:$0xff]
      %v330 = vld [vmem:[%s3 + $0x58] sm:$0xff]
      %v331 = vld [vmem:[%s3 + $0x60] sm:$0xff]
      %v332 = vld [vmem:[%s3 + $0x68] sm:$0xff]
      %v333 = vld [vmem:[%s3 + $0x70] sm:$0xff]
      %v334 = vld [vmem:[%s3 + $0x78] sm:$0xff]
      %335 = vmatpush.msra.mxu0 %v334
      %336 = vmatpush.msra.mxu0 %v333
      %337 = vmatpush.msra.mxu0 %v332
      %338 = vmatpush.msra.mxu0 %v331
      %339 = vmatpush.msra.mxu0 %v330
      %340 = vmatpush.msra.mxu0 %v329
      %341 = vmatpush.msra.mxu0 %v328
      %342 = vmatpush.msra.mxu0 %v327
      %343 = vmatpush.msra.mxu0 %v326
      %344 = vmatpush.msra.mxu0 %v325
      %345 = vmatpush.msra.mxu0 %v324
      %346 = vmatpush.msra.mxu0 %v323
      %347 = vmatpush.msra.mxu0 %v322
      %348 = vmatpush.msra.mxu0 %v321
      %349 = vmatpush.msra.mxu0 %v320
      %350 = vmatpush.msra.mxu0 %v319
      %351 = vmatmul.f32.gmra.mxu0 %v282
      %v352 = vpop.f32.mrf.mxu0
      %v353 = vadd.f32 0.0, %v352
      %354 = vdwg.mxu0
      %v355 = vmul.f32 %v317, %v317
      %v356 = vld [vmem:[%s4] sm:$0xff]
      %v357 = vld [vmem:[%s4 + $0x8] sm:$0xff]
      %v358 = vld [vmem:[%s4 + $0x10] sm:$0xff]
      %v359 = vld [vmem:[%s4 + $0x18] sm:$0xff]
      %v360 = vld [vmem:[%s4 + $0x20] sm:$0xff]
      %v361 = vld [vmem:[%s4 + $0x28] sm:$0xff]
      %v362 = vld [vmem:[%s4 + $0x30] sm:$0xff]
      %v363 = vld [vmem:[%s4 + $0x38] sm:$0xff]
      %v364 = vld [vmem:[%s4 + $0x40] sm:$0xff]
      %v365 = vld [vmem:[%s4 + $0x48] sm:$0xff]
      %v366 = vld [vmem:[%s4 + $0x50] sm:$0xff]
      %v367 = vld [vmem:[%s4 + $0x58] sm:$0xff]
      %v368 = vmul.f32 %v282, %v282
      %v369 = vld [vmem:[%s5] sm:$0xff]
      %v370 = vld [vmem:[%s5 + $0x8] sm:$0xff]
      %v371 = vld [vmem:[%s5 + $0x10] sm:$0xff]
      %v372 = vld [vmem:[%s5 + $0x18] sm:$0xff]
      %v373 = vld [vmem:[%s5 + $0x20] sm:$0xff]
      %v374 = vld [vmem:[%s5 + $0x28] sm:$0xff]
      %v375 = vld [vmem:[%s5 + $0x30] sm:$0xff]
      %v376 = vld [vmem:[%s5 + $0x38] sm:$0xff]
      %v377 = vld [vmem:[%s5 + $0x40] sm:$0xff]
      %v378 = vld [vmem:[%s5 + $0x48] sm:$0xff]
      %v379 = vld [vmem:[%s5 + $0x50] sm:$0xff]
      %v380 = vld [vmem:[%s5 + $0x58] sm:$0xff]
      %v381 = vld [vmem:[%s5 + $0x60] sm:$0xff]
      %v382 = vld [vmem:[%s5 + $0x68] sm:$0xff]
      %v383 = vld [vmem:[%s5 + $0x70] sm:$0xff]
      %v384 = vld [vmem:[%s5 + $0x78] sm:$0xff]
      %385 = vmatpush.msra.mxu0 %v384
      %386 = vmatpush.msra.mxu0 %v383
      %387 = vmatpush.msra.mxu0 %v382
      %388 = vmatpush.msra.mxu0 %v381
      %389 = vmatpush.msra.mxu0 %v380
      %390 = vmatpush.msra.mxu0 %v379
      %391 = vmatpush.msra.mxu0 %v378
      %392 = vmatpush.msra.mxu0 %v377
      %393 = vmatpush.msra.mxu0 %v376
      %394 = vmatpush.msra.mxu0 %v375
      %395 = vmatpush.msra.mxu0 %v374
      %396 = vmatpush.msra.mxu0 %v373
      %397 = vmatpush.msra.mxu0 %v372
      %398 = vmatpush.msra.mxu0 %v371
      %399 = vmatpush.msra.mxu0 %v370
      %400 = vmatpush.msra.mxu0 %v369
      %401 = vmatmul.f32.gmra.mxu0 %v368
      %v402 = vpop.f32.mrf.mxu0
      %v403 = vadd.f32 0.0, %v402
      %404 = vdwg.mxu0
      %vm405 = vcmask 785408
      %v407 = vsel %vm405, %v355, 0
      %409 = vmatpush.msra.mxu0 0.0
      %410 = vmatpush.msra.mxu0 0.0
      %411 = vmatpush.msra.mxu0 0.0
      %412 = vmatpush.msra.mxu0 0.0
      %413 = vmatpush.msra.mxu0 %v367
      %414 = vmatpush.msra.mxu0 %v366
      %415 = vmatpush.msra.mxu0 %v365
      %416 = vmatpush.msra.mxu0 %v364
      %417 = vmatpush.msra.mxu0 %v363
      %418 = vmatpush.msra.mxu0 %v362
      %419 = vmatpush.msra.mxu0 %v361
      %420 = vmatpush.msra.mxu0 %v360
      %421 = vmatpush.msra.mxu0 %v359
      %422 = vmatpush.msra.mxu0 %v358
      %423 = vmatpush.msra.mxu0 %v357
      %424 = vmatpush.msra.mxu0 %v356
      %425 = vmatmul.f32.gmra.mxu0 %v407
      %v426 = vpop.f32.mrf.mxu0
      %v427 = vadd.f32 %v403, %v426
      %428 = vdwg.mxu0
      %v429 = vmul.f32 %v353, %v353
      %v430 = vld [vmem:[%s6] sm:$0xff]
      %v431 = vld [vmem:[%s6 + $0x8] sm:$0xff]
      %v432 = vld [vmem:[%s6 + $0x10] sm:$0xff]
      %v433 = vld [vmem:[%s6 + $0x18] sm:$0xff]
      %v434 = vld [vmem:[%s6 + $0x20] sm:$0xff]
      %v435 = vld [vmem:[%s6 + $0x28] sm:$0xff]
      %v436 = vld [vmem:[%s6 + $0x30] sm:$0xff]
      %v437 = vld [vmem:[%s6 + $0x38] sm:$0xff]
      %v438 = vld [vmem:[%s6 + $0x40] sm:$0xff]
      %v439 = vld [vmem:[%s6 + $0x48] sm:$0xff]
      %v440 = vld [vmem:[%s6 + $0x50] sm:$0xf]
      %vm441 = vcmask 687104
      %v443 = vsel %vm441, %v429, 0
      %vm445 = vcmask 1043456
      %v447 = vsel %vm445, %v440, 0
      %449 = vmatpush.msra.mxu0 0.0
      %450 = vmatpush.msra.mxu0 0.0
      %451 = vmatpush.msra.mxu0 0.0
      %452 = vmatpush.msra.mxu0 0.0
      %453 = vmatpush.msra.mxu0 0.0
      %454 = vmatpush.msra.mxu0 %v447
      %455 = vmatpush.msra.mxu0 %v439
      %456 = vmatpush.msra.mxu0 %v438
      %457 = vmatpush.msra.mxu0 %v437
      %458 = vmatpush.msra.mxu0 %v436
      %459 = vmatpush.msra.mxu0 %v435
      %460 = vmatpush.msra.mxu0 %v434
      %461 = vmatpush.msra.mxu0 %v433
      %462 = vmatpush.msra.mxu0 %v432
      %463 = vmatpush.msra.mxu0 %v431
      %464 = vmatpush.msra.mxu0 %v430
      %465 = vmatmul.f32.gmra.mxu0 %v443
      %v466 = vpop.f32.mrf.mxu0
      %v467 = vadd.f32 0.0, %v466
      %468 = vdwg.mxu0
      %v469 = vrsqrt.pop %v467
      %v470 = vmul.f32 %v469, %v467
      %v471 = vmul.f32 %v470, %v469
      %v472 = vmul.f32 0.5, %v471
      %v473 = vsub.f32 1.5, %v472
      %v474 = vmul.f32 %v469, %v473
      %v475 = vmul.f32 %v467, %v474
      %vm476 = vcmp.eq.f32.partialorder %v467, inf
      %v477 = vsel %vm476, %v467, %v475
      %vm478 = vcmp.eq.f32.partialorder %v467, 0.0
      %v479 = vand.u32 %v467, 2147483648
      %v480 = vsel %vm478, %v479, %v477
      %vm481 = vcmp.lt.f32.partialorder %v480, 0.001
      %v482 = vmul.f32 %v480, 0.5
      %v483 = vmul.f32 %v482, %v480
      %v484 = vadd.f32 %v480, %v483
      %v485 = vmul.f32 %v480, 1.442695
      %v486 = vpow.pop %v485
      %v487 = vsub.f32 %v486, 1.0
      %v488 = vsel %vm481, %v484, %v487
      %v489 = vadd.f32 %v427, %v488
      %vm490 = vcmask 64512
      %491 = vst.msk [vmem:[%s273] sm:$0xff] %vm490, %v489
      %p492 = scmp.lt.s32.totalorder %s18, 1
      %s493 = scalar_select %p492, %s18, 1
      %s494 = smul.addr %s493, 8
      %s495 = scalar_lea.vmem %s7, %s494
      // Predicated region
      $region49: #{tpu_custom_call.1} parent=47 // pred_check
        %p496 = pneg %p188
      $region50: #{tpu_custom_call.1} parent=47 // pred_check_branch
        %498 = sbr.rel (%p496) target = $region52
      $region51: #{tpu_custom_call.1} parent=47 // pred_region
        _
      $region52: #{tpu_custom_call.1} parent=47 // pred_fallthru
        _
    $region48: #{tpu_custom_call.1} parent=5 // pred_fallthru
      _
    %p499 = scmp.le.s32.totalorder 2, %s13
    // Predicated region
    $region53: #{tpu_custom_call.1} parent=5 // pred_check
      %p500 = pneg %p499
    $region54: #{tpu_custom_call.1} parent=5 // pred_check_branch
      %502 = sbr.rel (%p500) target = $region56
    $region55: #{tpu_custom_call.1} parent=5 // pred_region
      %s503 = ssub.s32 %s13, 2
      // Predicated region
      $region57: #{tpu_custom_call.1} parent=55 // pred_check
        %p504 = pneg %p194
      $region58: #{tpu_custom_call.1} parent=55 // pred_check_branch
        %506 = sbr.rel (%p504) target = $region60
      $region59: #{tpu_custom_call.1} parent=55 // pred_region
        %p507 = scmp.lt.s32.totalorder %s19, 1
        %s508 = scalar_select %p507, %s19, 1
        %s509 = smul.addr %s508, 8
        %s510 = scalar_lea.vmem %s7, %s509
      $region60: #{tpu_custom_call.1} parent=55 // pred_fallthru
        _
    $region56: #{tpu_custom_call.1} parent=5 // pred_fallthru
      _
  $region6: #{tpu_custom_call.1} parent=0 // loop_footer
    %s17 = sadd.s32 1, %s13
  $region7: #{tpu_custom_call.1} parent=0 // loop_footer_branch
    %12 = sbr.rel target = $region3
  $region8: #{tpu_custom_call.1} parent=0 // loop_exit
    _

</llo_original>
